<compile_context>
chip_gen: v7x
topology: tpu7x:2x2x1
jax: 0.10.0
libtpu: 0.0.40
codegen_flags: <defaults>
</compile_context>

<pallas_src>
import functools
import math

import jax
import jax.numpy as jnp
from jax.experimental import pallas as pl
from jax.experimental.pallas import tpu as pltpu

EPS = 1e-12


# ----------------------------------------------------------------------------
# Generation-aware tiling / VMEM budget
# ----------------------------------------------------------------------------
def _tpu_budget():
    cap = 64 * 1024 * 1024
    try:
        cap = int(pltpu.get_tpu_info().vmem_capacity_bytes)
    except Exception:
        pass
    if cap >= 96 * 1024 * 1024:            # v5e / v6e: 128 MiB physical VMEM
        return 512, 96 * 1024 * 1024
    return 256, 40 * 1024 * 1024            # v7x-class: 64 MiB per TensorCore


def _cosine_norm(t):
    return t * jax.lax.rsqrt(jnp.sum(t * t, axis=-1, keepdims=True) + EPS)


def _softmax_rows(a):
    m = jnp.max(a, axis=-1, keepdims=True)
    e = jnp.exp(a - m)
    return e * pl.reciprocal(jnp.sum(e, axis=-1, keepdims=True), approx=True)


# ----------------------------------------------------------------------------
# Fused q/k/v projection: row-tiled + K-tiled, bf16 MXU, f32 accumulator,
# three separate bf16 outputs.
# ----------------------------------------------------------------------------
def _qkv_kernel(x_ref, w_ref, b_ref, q_ref, k_ref, v_ref, acc_ref, *,
                d_model, dk):
    kx = pl.program_id(1)

    @pl.when(kx == 0)
    def _():
        acc_ref[...] = jnp.zeros_like(acc_ref)

    acc_ref[...] += jnp.dot(x_ref[...].astype(jnp.bfloat16), w_ref[...],
                            preferred_element_type=jnp.float32)

    @pl.when(kx == pl.num_programs(1) - 1)
    def _():
        y = acc_ref[...] + b_ref[...]
        q_ref[...] = y[:, :d_model].astype(q_ref.dtype)
        k_ref[...] = y[:, d_model:d_model + dk].astype(k_ref.dtype)
        v_ref[...] = y[:, d_model + dk:].astype(v_ref.dtype)


def fused_qkv_proj(x, w_bf16, b, *, d_model, dk, row_tile, vmem_limit):
    n, din = x.shape
    dout = w_bf16.shape[1]
    tm = min(n, row_tile)
    tk = min(din, 512)
    kernel = functools.partial(_qkv_kernel, d_model=d_model, dk=dk)
    return pl.pallas_call(
        kernel,
        out_shape=(jax.ShapeDtypeStruct((n, d_model), jnp.bfloat16),
                   jax.ShapeDtypeStruct((n, dk), jnp.bfloat16),
                   jax.ShapeDtypeStruct((n, dk), jnp.bfloat16)),
        grid=(pl.cdiv(n, tm), pl.cdiv(din, tk)),
        in_specs=[
            pl.BlockSpec((tm, tk), lambda i, k: (i, k)),
            pl.BlockSpec((tk, dout), lambda i, k: (k, 0)),
            pl.BlockSpec((1, dout), lambda i, k: (0, 0)),
        ],
        out_specs=(pl.BlockSpec((tm, d_model), lambda i, k: (i, 0)),
                   pl.BlockSpec((tm, dk), lambda i, k: (i, 0)),
                   pl.BlockSpec((tm, dk), lambda i, k: (i, 0))),
        scratch_shapes=[pltpu.VMEM((tm, dout), jnp.float32)],
        compiler_params=pltpu.CompilerParams(
            dimension_semantics=("parallel", "arbitrary"),
            vmem_limit_bytes=vmem_limit),
    )(x, w_bf16, b)


# ----------------------------------------------------------------------------
# Differential GQA attention: grid=(B, S//tq), RoPE fused, per-head stores.
# Second output holds per-q-tile colsum(p0) @ V partials for the a3 term.
# ----------------------------------------------------------------------------
def _diff_attn_kernel(q_ref, k_ref, v_ref, cq_ref, sq_ref, ck_ref, sk_ref,
                      sc2_ref, lam_ref, om_ref, oc_ref, *,
                      nhead, groups, head_dim):
    hd2 = head_dim // 2
    half = hd2 // 2
    hpg = nhead // groups
    tq = q_ref.shape[0]
    s_len = k_ref.shape[0]

    lam = lam_ref[0]
    neg = jnp.float32(-1e9)

    row0 = pl.program_id(1) * tq
    row = jax.lax.broadcasted_iota(jnp.int32, (tq, s_len), 0) + row0
    col = jax.lax.broadcasted_iota(jnp.int32, (tq, s_len), 1)
    future = col > row                         # causal mask (strictly future)

    cq = cq_ref[...]
    sq = sq_ref[...]
    ck = ck_ref[...]
    sk = sk_ref[...]
    sc2 = sc2_ref[...]

    def rope(xh, c, s_signed):                 # rotate-half RoPE (sign in table)
        rot = jnp.concatenate([xh[:, half:], xh[:, :half]], axis=-1)
        return xh * c + rot * s_signed

    q = q_ref[...].astype(jnp.float32)
    k = k_ref[...].astype(jnp.float32)
    v = v_ref[...]

    # hoisted: RoPE + cosine-norm per kv half-head (shared across hpg q heads)
    k_heads = [
        _cosine_norm(rope(k[:, j * hd2:(j + 1) * hd2], ck, sk)).astype(jnp.bfloat16)
        for j in range(2 * groups)
    ]
    v_groups = [
        v[:, g * head_dim:(g + 1) * head_dim].astype(jnp.bfloat16)
        for g in range(groups)
    ]

    contract = (((1,), (1,)), ((), ()))
    for n in range(nhead):                     # differential pair = heads (2n, 2n+1)
        h0, h1 = 2 * n, 2 * n + 1
        q0 = _cosine_norm(rope(q[:, h0 * hd2:(h0 + 1) * hd2], cq, sq)) * sc2[h0:h0 + 1, :]
        q1 = _cosine_norm(rope(q[:, h1 * hd2:(h1 + 1) * hd2], cq, sq)) * sc2[h1:h1 + 1, :]
        a0 = jax.lax.dot_general(q0.astype(jnp.bfloat16), k_heads[h0 // hpg],
                                 contract, preferred_element_type=jnp.float32)
        a1 = jax.lax.dot_general(q1.astype(jnp.bfloat16), k_heads[h1 // hpg],
                                 contract, preferred_element_type=jnp.float32)
        p0 = _softmax_rows(jnp.where(future, neg, a0))
        p1 = _softmax_rows(jnp.where(future, neg, a1))
        vb = v_groups[n // hpg]
        comb = (p0 - lam * p1).astype(jnp.bfloat16)
        om_ref[:, n * head_dim:(n + 1) * head_dim] = jnp.dot(
            comb, vb, preferred_element_type=jnp.float32).astype(om_ref.dtype)
        cs0 = jnp.sum(p0, axis=0, keepdims=True).astype(jnp.bfloat16)
        oc_ref[:, n * head_dim:(n + 1) * head_dim] = jnp.dot(
            cs0, vb, preferred_element_type=jnp.float32)


def diff_attention(q, k, v, cos_t, sin_t, sc2, lam, *, nhead, groups,
                   head_dim, vmem_limit):
    B, S, d_model = q.shape
    dk = k.shape[-1]
    hd2 = head_dim // 2
    tq = 256 if S % 256 == 0 else S            # keep q-tiles exact (a3 colsums)
    nq = S // tq
    kernel = functools.partial(_diff_attn_kernel, nhead=nhead, groups=groups,
                               head_dim=head_dim)
    return pl.pallas_call(
        kernel,
        out_shape=(jax.ShapeDtypeStruct((B, S, d_model), jnp.bfloat16),
                   jax.ShapeDtypeStruct((B, nq, d_model), jnp.float32)),
        grid=(B, nq),
        in_specs=[
            pl.BlockSpec((None, tq, d_model), lambda b, i: (b, i, 0)),
            pl.BlockSpec((None, S, dk), lambda b, i: (b, 0, 0)),
            pl.BlockSpec((None, S, dk), lambda b, i: (b, 0, 0)),
            pl.BlockSpec((tq, hd2), lambda b, i: (i, 0)),
            pl.BlockSpec((tq, hd2), lambda b, i: (i, 0)),
            pl.BlockSpec((S, hd2), lambda b, i: (0, 0)),
            pl.BlockSpec((S, hd2), lambda b, i: (0, 0)),
            pl.BlockSpec((2 * nhead, hd2), lambda b, i: (0, 0)),
            pl.BlockSpec(memory_space=pltpu.MemorySpace.SMEM),
        ],
        out_specs=(pl.BlockSpec((None, tq, d_model), lambda b, i: (b, i, 0)),
                   pl.BlockSpec((None, 1, d_model), lambda b, i: (b, i, 0))),
        compiler_params=pltpu.CompilerParams(
            dimension_semantics=("parallel", "parallel"),
            vmem_limit_bytes=vmem_limit),
    )(q, k, v, cos_t, sin_t, cos_t, sin_t, sc2, lam)


# ----------------------------------------------------------------------------
# o-projection (K-tiled) + a3 correction + nGPT residual / cosine-norm epilogue
# ----------------------------------------------------------------------------
def _oproj_kernel(attn_ref, corr_ref, w_ref, b_ref, xres_ref, alpha_ref,
                  o_ref, acc_ref):
    kx = pl.program_id(2)

    @pl.when(kx == 0)
    def _():
        acc_ref[...] = jnp.zeros_like(acc_ref)

    a = attn_ref[...] + corr_ref[...]          # bf16, (1, tk) broadcast
    acc_ref[...] += jnp.dot(a, w_ref[...], preferred_element_type=jnp.float32)

    @pl.when(kx == pl.num_programs(2) - 1)
    def _():
        y = acc_ref[...] + b_ref[...]
        x = xres_ref[...]
        z = x + alpha_ref[...] * (_cosine_norm(y) - x)
        o_ref[...] = _cosine_norm(z).astype(o_ref.dtype)


def oproj_resnorm(attn, corr, w_bf16, b, xres, alpha, *, row_tile, vmem_limit):
    B, S, d = attn.shape
    tq = min(S, row_tile)
    tk = min(d, 512)
    return pl.pallas_call(
        _oproj_kernel,
        out_shape=jax.ShapeDtypeStruct((B, S, d), jnp.float32),
        grid=(B, pl.cdiv(S, tq), pl.cdiv(d, tk)),
        in_specs=[
            pl.BlockSpec((None, tq, tk), lambda b, i, k: (b, i, k)),
            pl.BlockSpec((None, 1, tk), lambda b, i, k: (b, 0, k)),
            pl.BlockSpec((tk, d), lambda b, i, k: (k, 0)),
            pl.BlockSpec((1, d), lambda b, i, k: (0, 0)),
            pl.BlockSpec((None, tq, d), lambda b, i, k: (b, i, 0)),
            pl.BlockSpec((1, d), lambda b, i, k: (0, 0)),
        ],
        out_specs=pl.BlockSpec((None, tq, d), lambda b, i, k: (b, i, 0)),
        scratch_shapes=[pltpu.VMEM((tq, d), jnp.float32)],
        compiler_params=pltpu.CompilerParams(
            dimension_semantics=("parallel", "parallel", "arbitrary"),
            vmem_limit_bytes=vmem_limit),
    )(attn, corr, w_bf16, b, xres, alpha)


# ----------------------------------------------------------------------------
# SwiGLU feed-forward tiled over d_ff + nGPT residual / cosine-norm epilogue
# ----------------------------------------------------------------------------
def _ff_kernel(x_ref, w1_ref, b1_ref, w2_ref, b2_ref, w3_ref, b3_ref,
               su_ref, sv_ref, alpha_ref, o_ref, acc_ref, *, sqrt_d_model):
    kf = pl.program_id(1)

    @pl.when(kf == 0)
    def _():
        acc_ref[...] = jnp.zeros_like(acc_ref)

    xb = x_ref[...].astype(jnp.bfloat16)
    u = (jnp.dot(xb, w1_ref[...], preferred_element_type=jnp.float32)
         + b1_ref[...]) * su_ref[...]
    v = (jnp.dot(xb, w2_ref[...], preferred_element_type=jnp.float32)
         + b2_ref[...]) * (sv_ref[...] * jnp.float32(sqrt_d_model))
    h = (u * (v * jax.nn.sigmoid(v))).astype(jnp.bfloat16)    # u * silu(v)
    acc_ref[...] += jnp.dot(h, w3_ref[...], preferred_element_type=jnp.float32)

    @pl.when(kf == pl.num_programs(1) - 1)
    def _():
        x = x_ref[...]
        y = acc_ref[...] + b3_ref[...]
        z = x + alpha_ref[...] * (_cosine_norm(y) - x)
        o_ref[...] = _cosine_norm(z).astype(o_ref.dtype)


def ff_resnorm(x, w1, b1, w2, b2, w3, b3, s_u, s_v, alpha, *, sqrt_d_model,
               row_tile, vmem_limit):
    n, d = x.shape
    d_ff = w1.shape[1]
    tm = min(n, row_tile)
    tf = min(d_ff, 512)
    kernel = functools.partial(_ff_kernel, sqrt_d_model=sqrt_d_model)
    return pl.pallas_call(
        kernel,
        out_shape=jax.ShapeDtypeStruct((n, d), jnp.float32),
        grid=(pl.cdiv(n, tm), pl.cdiv(d_ff, tf)),
        in_specs=[
            pl.BlockSpec((tm, d), lambda i, k: (i, 0)),
            pl.BlockSpec((d, tf), lambda i, k: (0, k)),
            pl.BlockSpec((1, tf), lambda i, k: (0, k)),
            pl.BlockSpec((d, tf), lambda i, k: (0, k)),
            pl.BlockSpec((1, tf), lambda i, k: (0, k)),
            pl.BlockSpec((tf, d), lambda i, k: (k, 0)),
            pl.BlockSpec((1, d), lambda i, k: (0, 0)),
            pl.BlockSpec((1, tf), lambda i, k: (0, k)),
            pl.BlockSpec((1, tf), lambda i, k: (0, k)),
            pl.BlockSpec((1, d), lambda i, k: (0, 0)),
        ],
        out_specs=pl.BlockSpec((tm, d), lambda i, k: (i, 0)),
        scratch_shapes=[pltpu.VMEM((tm, d), jnp.float32)],
        compiler_params=pltpu.CompilerParams(
            dimension_semantics=("parallel", "arbitrary"),
            vmem_limit_bytes=vmem_limit),
    )(x, w1, b1, w2, b2, w3, b3, s_u, s_v, alpha)


# ----------------------------------------------------------------------------
# RoPE tables (rotate-half sign folded into the sin table)
# ----------------------------------------------------------------------------
def rope_tables(S, dim):
    half = dim // 2
    inv_freq = 1.0 / (10000.0 ** (jnp.arange(0, dim, 2, dtype=jnp.float32) / dim))
    t = jnp.arange(S, dtype=jnp.float32)
    freqs = jnp.outer(t, inv_freq)
    emb = jnp.concatenate([freqs, freqs], axis=-1)            # (S, dim)
    cos = jnp.cos(emb)
    sin = jnp.sin(emb)
    sign = jnp.concatenate([-jnp.ones((half,), jnp.float32),
                            jnp.ones((dim - half,), jnp.float32)])
    return cos, sin * sign


# ----------------------------------------------------------------------------
# One-time parameter preparation (bf16 casts / fusions hoisted off hot path)
# ----------------------------------------------------------------------------
def prepare_params(p, *, d_model, nhead, groups):
    head_dim = d_model // nhead
    hd2 = head_dim // 2
    hpg = nhead // groups
    dk = d_model // hpg

    w_qkv = jnp.concatenate([p["wq"], p["wk"], p["wv"]], axis=1).astype(jnp.bfloat16)
    b_qkv = jnp.concatenate([p["bq"], p["bk"], p["bv"]]).reshape(1, -1).astype(jnp.float32)

    eff1 = p["s_qk1"] * math.sqrt(head_dim)
    eff2 = p["s_qk2"] * math.sqrt(head_dim)
    scaling = 1.0 / math.sqrt(head_dim)
    # both q and k are scaled by the same per-feature vector -> fold eff^2 and
    # the 1/sqrt(head_dim) attention scaling onto q only.
    sc2 = (jnp.concatenate([eff1, eff2], axis=0) ** 2 * scaling).astype(jnp.float32)

    lam = (jnp.exp(jnp.sum(p["lambda_k1"] * p["lambda_q1"]))
           - jnp.exp(jnp.sum(p["lambda_k2"] * p["lambda_q2"]))
           + p["lambda_init"]).reshape(1).astype(jnp.float32)

    return dict(
        w_qkv=w_qkv, b_qkv=b_qkv,
        wo=p["wo"].astype(jnp.bfloat16), bo=p["bo"].reshape(1, -1),
        w1=p["w1"].astype(jnp.bfloat16), b1=p["b1"].reshape(1, -1),
        w2=p["w2"].astype(jnp.bfloat16), b2=p["b2"].reshape(1, -1),
        w3=p["w3"].astype(jnp.bfloat16), b3=p["b3"].reshape(1, -1),
        s_u=p["s_u"].reshape(1, -1), s_v=p["s_v"].reshape(1, -1),
        sc2=sc2, lam=lam,
        alpha_a=(p["eigen_a"] * math.sqrt(d_model)).reshape(1, d_model),
        alpha_m=(p["eigen_m"] * math.sqrt(d_model)).reshape(1, d_model),
        d_model=d_model, nhead=nhead, groups=groups,
        head_dim=head_dim, dk=dk,
    )


# ----------------------------------------------------------------------------
# Block forward
# ----------------------------------------------------------------------------
def dint_ngpt_block_forward(x, prep):
    B, S, d_model = x.shape
    nhead, groups = prep["nhead"], prep["groups"]
    head_dim, dk = prep["head_dim"], prep["dk"]
    hd2 = head_dim // 2
    n = B * S
    row_tile, vmem_limit = _tpu_budget()

    xf = x.reshape(n, d_model)

    qf, kf, vf = fused_qkv_proj(xf, prep["w_qkv"], prep["b_qkv"],
                                d_model=d_model, dk=dk,
                                row_tile=row_tile, vmem_limit=vmem_limit)
    q = qf.reshape(B, S, d_model)
    k = kf.reshape(B, S, dk)
    v = vf.reshape(B, S, dk)

    cos_t, sin_t = rope_tables(S, hd2)

    attn, s0v = diff_attention(q, k, v, cos_t, sin_t, prep["sc2"], prep["lam"],
                               nhead=nhead, groups=groups, head_dim=head_dim,
                               vmem_limit=vmem_limit)

    # a3 correction: lam * mean_q(p0) @ V per (batch, head) -> per-batch row
    corr = ((prep["lam"][0] / S)
            * jnp.sum(s0v, axis=1, keepdims=True)).astype(jnp.bfloat16)

    x1 = oproj_resnorm(attn, corr, prep["wo"], prep["bo"], x, prep["alpha_a"],
                       row_tile=row_tile, vmem_limit=vmem_limit)

    x2 = ff_resnorm(x1.reshape(n, d_model),
                    prep["w1"], prep["b1"], prep["w2"], prep["b2"],
                    prep["w3"], prep["b3"], prep["s_u"], prep["s_v"],
                    prep["alpha_m"], sqrt_d_model=math.sqrt(d_model),
                    row_tile=row_tile, vmem_limit=vmem_limit)
    return x2.reshape(B, S, d_model)


# ----------------------------------------------------------------------------
# Pure-JAX f32 reference (mirrors the PyTorch module op-for-op)
# ----------------------------------------------------------------------------
def apply_rope(x):
    """Standard rotate-half RoPE; x: (B, S, H, dim)."""
    _, S, _, dim = x.shape
    half = dim // 2
    inv_freq = 1.0 / (10000.0 ** (jnp.arange(0, dim, 2, dtype=jnp.float32) / dim))
    t = jnp.arange(S, dtype=jnp.float32)
    freqs = jnp.outer(t, inv_freq)
    emb = jnp.concatenate([freqs, freqs], axis=-1)
    cos = jnp.cos(emb)[None, :, None, :]
    sin = jnp.sin(emb)[None, :, None, :]
    x1, x2 = x[..., :half], x[..., half:]
    rot = jnp.concatenate([-x2, x1], axis=-1)
    return x * cos + rot * sin


def reference_forward(x, p, *, nhead, groups):
    B, S, d_model = x.shape
    head_dim = d_model // nhead
    hd2 = head_dim // 2
    hpg = nhead // groups

    def cn(t):
        return t / jnp.sqrt(jnp.sum(t * t, axis=-1, keepdims=True) + EPS)

    xf = x.reshape(B * S, d_model)
    q = (xf @ p["wq"] + p["bq"]).reshape(B, S, 2 * nhead, hd2)
    k = (xf @ p["wk"] + p["bk"]).reshape(B, S, 2 * groups, hd2)
    v = (xf @ p["wv"] + p["bv"]).reshape(B, S, groups, head_dim)
    q = apply_rope(q)
    k = apply_rope(k)
    q = jnp.transpose(q, (0, 2, 1, 3))
    k = jnp.repeat(jnp.transpose(k, (0, 2, 1, 3)), hpg, axis=1)
    v = jnp.repeat(jnp.transpose(v, (0, 2, 1, 3)), hpg, axis=1)

    eff1 = p["s_qk1"] * math.sqrt(head_dim)
    eff2 = p["s_qk2"] * math.sqrt(head_dim)
    q1 = jnp.transpose(cn(q[:, :nhead]), (0, 2, 1, 3)) * eff1
    k1 = jnp.transpose(cn(k[:, :nhead]), (0, 2, 1, 3)) * eff1
    q2 = jnp.transpose(cn(q[:, nhead:]), (0, 2, 1, 3)) * eff2
    k2 = jnp.transpose(cn(k[:, nhead:]), (0, 2, 1, 3)) * eff2
    qq = jnp.transpose(jnp.concatenate([q1, q2], axis=2), (0, 2, 1, 3))
    kk = jnp.transpose(jnp.concatenate([k1, k2], axis=2), (0, 2, 1, 3))
    a = jnp.einsum("bhqd,bhkd->bhqk", qq, kk) / math.sqrt(head_dim)
    mask = jnp.triu(jnp.ones((S, S), jnp.bool_), k=1)
    a = jnp.where(mask, -1e9, a)
    a = jax.nn.softmax(a, axis=-1)

    lam1 = jnp.exp(jnp.sum(p["lambda_k1"] * p["lambda_q1"]))
    lam2 = jnp.exp(jnp.sum(p["lambda_k2"] * p["lambda_q2"]))
    lam = lam1 - lam2 + p["lambda_init"]
    a = a.reshape(B, nhead, 2, S, S)
    a3 = jnp.mean(a[:, :, 0], axis=-2, keepdims=True)
    acomb = a[:, :, 0] - lam * a[:, :, 1] + lam * a3
    attn = jnp.einsum("bhqk,bhkd->bhqd", acomb, v)
    attn = jnp.transpose(attn, (0, 2, 1, 3)).reshape(B * S, d_model)
    y = attn @ p["wo"] + p["bo"]

    def resnorm(xv, yv, alpha):
        return cn(xv + alpha * (cn(yv) - xv))

    x1 = resnorm(xf, y, p["eigen_a"] * math.sqrt(d_model))
    u = (x1 @ p["w1"] + p["b1"]) * p["s_u"]
    vv = (x1 @ p["w2"] + p["b2"]) * p["s_v"] * math.sqrt(d_model)
    h = u * (vv * jax.nn.sigmoid(vv))
    ff = h @ p["w3"] + p["b3"]
    x2 = resnorm(x1, ff, p["eigen_m"] * math.sqrt(d_model))
    return x2.reshape(B, S, d_model)


# ----------------------------------------------------------------------------
# Deterministic parameter initialization (torch-layout raw params)
# ----------------------------------------------------------------------------
def init_params(key, d_model, nhead, groups, d_ff, depth=0):
    head_dim = d_model // nhead
    hd2 = head_dim // 2
    hpg = nhead // groups
    dk = d_model // hpg

    def lin(k, din, dout):
        k1, k2 = jax.random.split(k)
        bound = 1.0 / math.sqrt(din)
        w = jax.random.uniform(k1, (din, dout), jnp.float32, -bound, bound)
        b = jax.random.uniform(k2, (dout,), jnp.float32, -bound, bound)
        return w, b

    keys = jax.random.split(key, 12)
    wq, bq = lin(keys[0], d_model, d_model)
    wk, bk = lin(keys[1], d_model, dk)
    wv, bv = lin(keys[2], d_model, dk)
    wo, bo = lin(keys[3], d_model, d_model)
    w1, b1 = lin(keys[4], d_model, d_ff)
    w2, b2 = lin(keys[5], d_model, d_ff)
    w3, b3 = lin(keys[6], d_ff, d_model)

    return dict(
        wq=wq, bq=bq, wk=wk, bk=bk, wv=wv, bv=bv, wo=wo, bo=bo,
        w1=w1, b1=b1, w2=w2, b2=b2, w3=w3, b3=b3,
        s_qk1=jnp.ones((nhead, hd2), jnp.float32) / math.sqrt(head_dim),
        s_qk2=jnp.ones((nhead, hd2), jnp.float32) / math.sqrt(head_dim),
        lambda_k1=0.1 * jax.random.normal(keys[7], (hd2,), jnp.float32),
        lambda_k2=0.1 * jax.random.normal(keys[8], (hd2,), jnp.float32),
        lambda_q1=0.1 * jax.random.normal(keys[9], (hd2,), jnp.float32),
        lambda_q2=0.1 * jax.random.normal(keys[10], (hd2,), jnp.float32),
        lambda_init=jnp.float32(0.8 - 0.6 * math.exp(-0.3 * depth)),
        eigen_a=jnp.ones((d_model,), jnp.float32) / math.sqrt(d_model),
        eigen_m=jnp.ones((d_model,), jnp.float32) / math.sqrt(d_model),
        s_u=jnp.ones((d_ff,), jnp.float32),
        s_v=jnp.ones((d_ff,), jnp.float32),
    )


# ----------------------------------------------------------------------------
if __name__ == "__main__":
    B, S = 2, 8
    d_model, nhead, groups, d_ff = 64, 8, 4, 128

    key = jax.random.PRNGKey(0)
    kp, kx = jax.random.split(key)
    raw = init_params(kp, d_model, nhead, groups, d_ff, depth=0)
    prep = prepare_params(raw, d_model=d_model, nhead=nhead, groups=groups)
    x = jax.random.normal(kx, (B, S, d_model), jnp.float32)

    out = dint_ngpt_block_forward(x, prep)
    out = jax.block_until_ready(out)

    assert out.shape == (B, S, d_model)
    assert bool(jnp.all(jnp.isfinite(out)))
    # final op is a cosine_norm -> every token vector must be unit-norm.
    norms = jnp.linalg.norm(out, axis=-1)
    assert bool(jnp.allclose(norms, 1.0, atol=2e-3)), norms
    # cross-check against a pure-JAX f32 reference of the same forward
    # (tolerance covers bf16 MXU operands / bf16 intermediates + approx recip).
    ref = reference_forward(x, raw, nhead=nhead, groups=groups)
    max_err = float(jnp.max(jnp.abs(out - ref)))
    assert max_err < 5e-2, max_err

    print("KERNEL_OK")
</pallas_src>

<mosaic_0001>
module attributes {stable_mosaic.version = 11 : i64} {
  func.func @_qkv_kernel(%arg0: i32, %arg1: i32, %arg2: memref<16x64xf32, #tpu.memory_space<vmem>>, %arg3: memref<64x128xbf16, #tpu.memory_space<vmem>>, %arg4: memref<1x128xf32, #tpu.memory_space<vmem>>, %arg5: memref<16x64xbf16, #tpu.memory_space<vmem>>, %arg6: memref<16x32xbf16, #tpu.memory_space<vmem>>, %arg7: memref<16x32xbf16, #tpu.memory_space<vmem>>, %arg8: memref<16x128xf32, #tpu.memory_space<vmem>>) attributes {dimension_semantics = [#tpu.dimension_semantics<parallel>, #tpu.dimension_semantics<arbitrary>], iteration_bounds = array<i64: 1, 1>, scalar_prefetch = 0 : i64, scratch_operands = 1 : i64, tpu.core_type = #tpu.core_type<tc>, window_params = [{transform_indices = @transform_0, window_bounds = array<i64: 16, 64>}, {transform_indices = @transform_1, window_bounds = array<i64: 64, 128>}, {pipeline_mode = #tpu.pipeline_mode<synchronous>, transform_indices = @transform_2, window_bounds = array<i64: 1, 128>}, {transform_indices = @transform_3, window_bounds = array<i64: 16, 64>}, {transform_indices = @transform_4, window_bounds = array<i64: 16, 32>}, {transform_indices = @transform_5, window_bounds = array<i64: 16, 32>}]} {
    %c0_i32 = arith.constant 0 : i32
    %0 = arith.cmpi eq, %arg1, %c0_i32 : i32
    %1 = arith.extui %0 : i1 to i32
    %c0_i32_0 = arith.constant 0 : i32
    %2 = arith.cmpi ne, %1, %c0_i32_0 : i32
    scf.if %2 {
      %cst_10 = arith.constant 0.000000e+00 : f32
      %13 = vector.broadcast %cst_10 : f32 to vector<16x128xf32>
      %c0_11 = arith.constant 0 : index
      %c0_12 = arith.constant 0 : index
      %14 = vector.load %arg8[%c0_11, %c0_12] : memref<16x128xf32, #tpu.memory_space<vmem>>, vector<16x128xf32>
      tpu.vector_store %arg8[%c0_11, %c0_12], %13 {strides = array<i32>} : memref<16x128xf32, #tpu.memory_space<vmem>>, vector<16x128xf32>,
    } else {
    }
    %c0 = arith.constant 0 : index
    %c0_1 = arith.constant 0 : index
    %3 = vector.load %arg8[%c0, %c0_1] : memref<16x128xf32, #tpu.memory_space<vmem>>, vector<16x128xf32>
    %c0_2 = arith.constant 0 : index
    %c0_3 = arith.constant 0 : index
    %4 = vector.load %arg2[%c0_2, %c0_3] : memref<16x64xf32, #tpu.memory_space<vmem>>, vector<16x64xf32>
    %5 = arith.truncf %4 : vector<16x64xf32> to vector<16x64xbf16>
    %c0_4 = arith.constant 0 : index
    %c0_5 = arith.constant 0 : index
    %6 = vector.load %arg3[%c0_4, %c0_5] : memref<64x128xbf16, #tpu.memory_space<vmem>>, vector<64x128xbf16>
    %cst = arith.constant dense<0.000000e+00> : vector<16x128xf32>
    %7 = tpu.matmul %5, %6, %cst {dimension_numbers = #tpu.dot_dimension_numbers<[1], [0], [0], [1], [0, 0, 1, 1], [], []>} : vector<16x64xbf16>, vector<64x128xbf16>, vector<16x128xf32> -> vector<16x128xf32>
    %8 = arith.addf %3, %7 : vector<16x128xf32>
    %c0_6 = arith.constant 0 : index
    %c0_7 = arith.constant 0 : index
    %9 = vector.load %arg8[%c0_6, %c0_7] : memref<16x128xf32, #tpu.memory_space<vmem>>, vector<16x128xf32>
    tpu.vector_store %arg8[%c0_6, %c0_7], %8 {strides = array<i32>} : memref<16x128xf32, #tpu.memory_space<vmem>>, vector<16x128xf32>,
    %c0_i32_8 = arith.constant 0 : i32
    %10 = arith.cmpi eq, %arg1, %c0_i32_8 : i32
    %11 = arith.extui %10 : i1 to i32
    %c0_i32_9 = arith.constant 0 : i32
    %12 = arith.cmpi ne, %11, %c0_i32_9 : i32
    scf.if %12 {
      %c0_10 = arith.constant 0 : index
      %c0_11 = arith.constant 0 : index
      %13 = vector.load %arg8[%c0_10, %c0_11] : memref<16x128xf32, #tpu.memory_space<vmem>>, vector<16x128xf32>
      %c0_12 = arith.constant 0 : index
      %c0_13 = arith.constant 0 : index
      %14 = vector.load %arg4[%c0_12, %c0_13] : memref<1x128xf32, #tpu.memory_space<vmem>>, vector<1x128xf32>
      %15 = vector.broadcast %14 : vector<1x128xf32> to vector<16x128xf32>
      %16 = arith.addf %13, %15 : vector<16x128xf32>
      %17 = vector.extract_strided_slice %16 {offsets = [0, 0], sizes = [16, 64], strides = [1, 1]} : vector<16x128xf32> to vector<16x64xf32>
      %18 = arith.truncf %17 : vector<16x64xf32> to vector<16x64xbf16>
      %c0_14 = arith.constant 0 : index
      %c0_15 = arith.constant 0 : index
      %19 = vector.load %arg5[%c0_14, %c0_15] : memref<16x64xbf16, #tpu.memory_space<vmem>>, vector<16x64xbf16>
      tpu.vector_store %arg5[%c0_14, %c0_15], %18 {strides = array<i32>} : memref<16x64xbf16, #tpu.memory_space<vmem>>, vector<16x64xbf16>,
      %20 = vector.extract_strided_slice %16 {offsets = [0, 64], sizes = [16, 32], strides = [1, 1]} : vector<16x128xf32> to vector<16x32xf32>
      %21 = arith.truncf %20 : vector<16x32xf32> to vector<16x32xbf16>
      %c0_16 = arith.constant 0 : index
      %c0_17 = arith.constant 0 : index
      %22 = vector.load %arg6[%c0_16, %c0_17] : memref<16x32xbf16, #tpu.memory_space<vmem>>, vector<16x32xbf16>
      tpu.vector_store %arg6[%c0_16, %c0_17], %21 {strides = array<i32>} : memref<16x32xbf16, #tpu.memory_space<vmem>>, vector<16x32xbf16>,
      %23 = vector.extract_strided_slice %16 {offsets = [0, 96], sizes = [16, 32], strides = [1, 1]} : vector<16x128xf32> to vector<16x32xf32>
      %24 = arith.truncf %23 : vector<16x32xf32> to vector<16x32xbf16>
      %c0_18 = arith.constant 0 : index
      %c0_19 = arith.constant 0 : index
      %25 = vector.load %arg7[%c0_18, %c0_19] : memref<16x32xbf16, #tpu.memory_space<vmem>>, vector<16x32xbf16>
      tpu.vector_store %arg7[%c0_18, %c0_19], %24 {strides = array<i32>} : memref<16x32xbf16, #tpu.memory_space<vmem>>, vector<16x32xbf16>,
    } else {
    }
    return
  }
  func.func @transform_0(%arg0: i32, %arg1: i32) -> (i32, i32) {
    %c0_i32 = arith.constant 0 : i32
    return %arg0, %arg1 : i32, i32
  }
  func.func @transform_1(%arg0: i32, %arg1: i32) -> (i32, i32) {
    %c0_i32 = arith.constant 0 : i32
    %c0_i32_0 = arith.constant 0 : i32
    return %arg1, %c0_i32 : i32, i32
  }
  func.func @transform_2(%arg0: i32, %arg1: i32) -> (i32, i32) {
    %c0_i32 = arith.constant 0 : i32
    %c0_i32_0 = arith.constant 0 : i32
    %c0_i32_1 = arith.constant 0 : i32
    return %c0_i32, %c0_i32_0 : i32, i32
  }
  func.func @transform_3(%arg0: i32, %arg1: i32) -> (i32, i32) {
    %c0_i32 = arith.constant 0 : i32
    %c0_i32_0 = arith.constant 0 : i32
    return %arg0, %c0_i32 : i32, i32
  }
  func.func @transform_4(%arg0: i32, %arg1: i32) -> (i32, i32) {
    %c0_i32 = arith.constant 0 : i32
    %c0_i32_0 = arith.constant 0 : i32
    return %arg0, %c0_i32 : i32, i32
  }
  func.func @transform_5(%arg0: i32, %arg1: i32) -> (i32, i32) {
    %c0_i32 = arith.constant 0 : i32
    %c0_i32_0 = arith.constant 0 : i32
    return %arg0, %c0_i32 : i32, i32
  }
}

</mosaic_0001>

<llo_original>
// kernel: tpu_custom_call.1
$region0: #{tpu_custom_call.1}
  #allocation0 [shape = 'u32[]', space=smem, size = 0x4, offset = 0x4, fixed_abs, tag = 'smem constant byte address 0x4 - core index']
  #allocation1 [shape = 'u32[144,128]{1,0:T(1,128)}', space=vmem, size = 0x12000, scoped, tag = 'internal scratch']
  #allocation2 [shape = 'f32[16,128]{1,0:T(8,128)}', space=vmem, size = 0x2000, scoped, tag = 'scratch operand']
  %s0 = inlined_call_operand.hbm [shape: f32[16,64], index: 0, kind: input, shape index: {}]
  %s1 = inlined_call_operand.hbm [shape: bf16[64,128], index: 1, kind: input, shape index: {}]
  %s2 = inlined_call_operand.vmem [shape: f32[1,128], index: 2, kind: input, shape index: {}]
  %s3 = inlined_call_operand.hbm [shape: bf16[16,64], index: 3, kind: output, shape index: {0}]
  %s4 = inlined_call_operand.hbm [shape: bf16[16,32], index: 4, kind: output, shape index: {1}]
  %s5 = inlined_call_operand.hbm [shape: bf16[16,32], index: 5, kind: output, shape index: {2}]
  %6 = xla_tuple %s3, %s4, %s5
  %s7 = sld [smem:[#allocation0]]
  $region54: #{tpu_custom_call.1} parent=0
    _
  %s9 = ssub.s32 1, %s7
  %s10 = scalar_select 0, %s9, %s7
  $region1: #{tpu_custom_call.1} parent=0
    #allocation3 [shape = 'u8[8192]{0}', space=vmem, size = 0x2000, scoped, tag = 'input window, operand 0, single buffered']
    #allocation4 [shape = 's32[1]{0}', space=sflag, size = 0x4, scoped, tag = 'scoped memory for tpu_custom_call.1']
    #allocation5 [shape = 's32[1]{0}', space=sflag, size = 0x4, scoped, tag = 'scoped memory for tpu_custom_call.1']
    #allocation6 [shape = 'u8[16384]{0}', space=vmem, size = 0x4000, scoped, tag = 'input window, operand 1, single buffered']
    #allocation7 [shape = 's32[1]{0}', space=sflag, size = 0x4, scoped, tag = 'scoped memory for tpu_custom_call.1']
    #allocation8 [shape = 'u8[4096]{0}', space=vmem, size = 0x1000, scoped, tag = 'output window, operand 0, single buffered']
    #allocation9 [shape = 'u8[4096]{0}', space=vmem, size = 0x1000, scoped, tag = 'output window, operand 1, single buffered']
    #allocation10 [shape = 's32[1]{0}', space=sflag, size = 0x4, scoped, tag = 'scoped memory for tpu_custom_call.1']
    #allocation11 [shape = 'u8[4096]{0}', space=vmem, size = 0x1000, scoped, tag = 'output window, operand 2, single buffered']
    %11 = vsyncpa [#allocation4], 0
    %12 = vsyncpa [#allocation7], 0
    %13 = vsyncpa [#allocation5], 0
    %14 = vsyncpa [#allocation10], 0
    // Predicated region
    $region2: #{tpu_custom_call.1} parent=1 // pred_check
      _
    $region3: #{tpu_custom_call.1} parent=1 // pred_check_branch
      %16 = sbr.rel (0) target = $region5
    $region4: #{tpu_custom_call.1} parent=1 // pred_region
      %s18 = ssub.s32 256, 256
      %19 = vsyncadd [#allocation4], %s18
      %s20 = sshll.u32 [#allocation3], 4
      %s21 = int_to_ptr.vmem [resolvable:$true] %s20
      %26 = dma.hbm_to_vmem [thread:$0]  %s0, 256, %s21, [#allocation4], 128, 128, 8
    $region5: #{tpu_custom_call.1} parent=1 // pred_fallthru
      _
    // Predicated region
    $region6: #{tpu_custom_call.1} parent=1 // pred_check
      _
    $region7: #{tpu_custom_call.1} parent=1 // pred_check_branch
      %28 = sbr.rel (0) target = $region9
    $region8: #{tpu_custom_call.1} parent=1 // pred_region
      %s30 = ssub.s32 512, 512
      %31 = vsyncadd [#allocation7], %s30
      %s32 = sshll.u32 [#allocation6], 4
      %s33 = int_to_ptr.vmem [resolvable:$true] %s32
      %38 = dma.hbm_to_vmem [thread:$0]  %s1, 512, %s33, [#allocation7], 64, 64, 4
    $region9: #{tpu_custom_call.1} parent=1 // pred_fallthru
      _
    // Predicated region
    $region10: #{tpu_custom_call.1} parent=1 // pred_check
      _
    $region11: #{tpu_custom_call.1} parent=1 // pred_check_branch
      %40 = sbr.rel (0) target = $region13
    $region12: #{tpu_custom_call.1} parent=1 // pred_region
      _
    $region13: #{tpu_custom_call.1} parent=1 // pred_fallthru
      _
    // Predicated region
    $region14: #{tpu_custom_call.1} parent=1 // pred_check
      _
    $region15: #{tpu_custom_call.1} parent=1 // pred_check_branch
      %42 = sbr.rel (0) target = $region17
    $region16: #{tpu_custom_call.1} parent=1 // pred_region
      %43 = dma.done [#allocation4], 256
    $region17: #{tpu_custom_call.1} parent=1 // pred_fallthru
      _
    // Predicated region
    $region18: #{tpu_custom_call.1} parent=1 // pred_check
      _
    $region19: #{tpu_custom_call.1} parent=1 // pred_check_branch
      %45 = sbr.rel (0) target = $region21
    $region20: #{tpu_custom_call.1} parent=1 // pred_region
      %46 = dma.done [#allocation7], 512
    $region21: #{tpu_custom_call.1} parent=1 // pred_fallthru
      _
    %p48 = scmp.eq.s32.totalorder 0, 0
    // Predicated region
    $region22: #{tpu_custom_call.1} parent=1 // pred_check
      %p49 = pneg %p48
    $region23: #{tpu_custom_call.1} parent=1 // pred_check_branch
      %51 = sbr.rel (%p49) target = $region25
    $region24: #{tpu_custom_call.1} parent=1 // pred_region
      %52 = vst [vmem:[#allocation2] sm:$0xff] 0.0
      %53 = vst [vmem:[#allocation2 + $0x8] sm:$0xff] 0.0
    $region25: #{tpu_custom_call.1} parent=1 // pred_fallthru
      _
    %v54 = vld [vmem:[#allocation2] sm:$0xff]
    %v55 = vld [vmem:[#allocation2 + $0x8] sm:$0xff]
    %v56 = vld [vmem:[#allocation3] sm:$0xff]
    %v57 = vld [vmem:[#allocation3 + $0x8] sm:$0xff]
    %v58 = vpack.c.bf16 %v57, %v56
    %v59 = vld [vmem:[#allocation6] sm:$0xf]
    %v60 = vld [vmem:[#allocation6 + $0x4] sm:$0xf]
    %v61 = vld [vmem:[#allocation6 + $0x8] sm:$0xf]
    %v62 = vld [vmem:[#allocation6 + $0xc] sm:$0xf]
    %v63 = vld [vmem:[#allocation6 + $0x10] sm:$0xf]
    %v64 = vld [vmem:[#allocation6 + $0x14] sm:$0xf]
    %v65 = vld [vmem:[#allocation6 + $0x18] sm:$0xf]
    %v66 = vld [vmem:[#allocation6 + $0x1c] sm:$0xf]
    %v75 = vunpack.c.l.b16 %v59
    %v76 = vunpack.c.l.b16 %v60
    %v77 = vunpack.c.l.b16 %v61
    %v78 = vunpack.c.l.b16 %v62
    %v79 = vunpack.c.l.b16 %v63
    %v80 = vunpack.c.l.b16 %v64
    %v81 = vunpack.c.l.b16 %v65
    %v82 = vunpack.c.l.b16 %v66
    %v83 = vpack.c.b16 %v76, %v75
    %v84 = vpack.c.b16 %v78, %v77
    %v85 = vpack.c.b16 %v80, %v79
    %v86 = vpack.c.b16 %v82, %v81
    %vm91 = vcmask 523264
    %v93 = vsel %vm91, %v58, 0
    %95 = vmatprep.subr.bf16.mxu0 0
    %96 = vmatpush1.bf16.msra.mxu0 %v83
    %97 = vmatprep.subr.bf16.mxu0 0
    %98 = vmatpush1.bf16.msra.mxu0 %v84
    %99 = vmatprep.subr.bf16.mxu0 0
    %100 = vmatpush1.bf16.msra.mxu0 %v85
    %101 = vmatprep.subr.bf16.mxu0 0
    %102 = vmatpush1.bf16.msra.mxu0 %v86
    %103 = vmatprep.subr.bf16.mxu0 0
    %104 = vmatpush1.bf16.msra.mxu0 0
    %105 = vmatprep.subr.bf16.mxu0 0
    %106 = vmatpush1.bf16.msra.mxu0 0
    %107 = vmatprep.subr.bf16.mxu0 0
    %108 = vmatpush1.bf16.msra.mxu0 0
    %109 = vmatprep.subr.bf16.mxu0 0
    %110 = vmatpush1.bf16.msra.mxu0 0
    %111 = vmatprep.subr.bf16.mxu0 0
    %112 = vmatpush1.bf16.msra.mxu0 0
    %113 = vmatprep.subr.bf16.mxu0 0
    %114 = vmatpush1.bf16.msra.mxu0 0
    %115 = vmatprep.subr.bf16.mxu0 0
    %116 = vmatpush1.bf16.msra.mxu0 0
    %117 = vmatprep.subr.bf16.mxu0 0
    %118 = vmatpush1.bf16.msra.mxu0 0
    %119 = vmatprep.subr.bf16.mxu0 0
    %120 = vmatpush1.bf16.msra.mxu0 0
    %121 = vmatprep.subr.bf16.mxu0 0
    %122 = vmatpush1.bf16.msra.mxu0 0
    %123 = vmatprep.subr.bf16.mxu0 0
    %124 = vmatpush1.bf16.msra.mxu0 0
    %125 = vmatprep.subr.bf16.mxu0 0
    %126 = vmatpush1.bf16.msra.mxu0 0
    %127 = vmatprep.mubr.bf16.mxu0 0
    %128 = vmatmul.mubr.bf16.gmra.mrb[0].mxu0 %v93
    %v129 = vpop.f32.mrb[0].mxu0
    %v130 = vadd.f32 0.0, %v129
    %v131 = vpop.f32.mrb[0].mxu0
    %v132 = vpop.f32.mrb[0].mxu0
    %v133 = vadd.f32 0.0, %v132
    %v134 = vpop.f32.mrb[0].mxu0
    %135 = vdwg.mxu0
    %v136 = vadd.f32 %v54, %v130
    %v137 = vadd.f32 %v55, %v133
    %138 = vst [vmem:[#allocation2] sm:$0xff] %v136
    %139 = vst [vmem:[#allocation2 + $0x8] sm:$0xff] %v137
    // Predicated region
    $region26: #{tpu_custom_call.1} parent=1 // pred_check
      %p140 = pneg %p48
    $region27: #{tpu_custom_call.1} parent=1 // pred_check_branch
      %142 = sbr.rel (%p140) target = $region29
    $region28: #{tpu_custom_call.1} parent=1 // pred_region
      %v143 = vld [vmem:[#allocation2] sm:$0xff]
      %v144 = vld [vmem:[#allocation2 + $0x8] sm:$0xff]
      %v145 = vld [vmem:[%s2] sm:$0x1]
      %v147 = vlaneseq
      %v148 = vshrl.u32 %v147, 7
      %v149 = vsub.s32 0, %v148
      %v150 = vrot.slane %v145, %v149
      %v152 = vadd.f32 %v143, %v150
      %v153 = vadd.f32 %v144, %v150
      %v154 = vpack.c.bf16 %v153, %v152
      %v156 = vunpack.c.l.b16 %v154
      %v157 = vunpack.c.h.b16 %v154
      %v158 = vpack.c.b16 %v156, %v156
      %v159 = vpack.c.b16 %v157, %v157
      %vm162 = vcmask 519168
      %163 = vst.msk [vmem:[#allocation8] sm:$0xf] %vm162, %v158
      %164 = vst.msk [vmem:[#allocation8 + $0x4] sm:$0xf] %vm162, %v159
      %165 = vrot.lane.b32.xlu0 %v158, 64
      %v166 = vpop.permute.xlu0 %165
      %167 = vrot.lane.b32.xlu0 %v159, 64
      %v168 = vpop.permute.xlu0 %167
      %vm171 = vcmask 257024
      %172 = vst.msk [vmem:[#allocation9] sm:$0xf] %vm171, %v166
      %173 = vst.msk [vmem:[#allocation9 + $0x4] sm:$0xf] %vm171, %v168
      %174 = vrot.lane.b32.xlu0 %v158, 32
      %v175 = vpop.permute.xlu0 %174
      %176 = vrot.lane.b32.xlu0 %v159, 32
      %v177 = vpop.permute.xlu0 %176
      %180 = vst.msk [vmem:[#allocation11] sm:$0xf] %vm171, %v175
      %181 = vst.msk [vmem:[#allocation11 + $0x4] sm:$0xf] %vm171, %v177
    $region29: #{tpu_custom_call.1} parent=1 // pred_fallthru
      _
    // Predicated region
    $region30: #{tpu_custom_call.1} parent=1 // pred_check
      _
    $region31: #{tpu_custom_call.1} parent=1 // pred_check_branch
      %183 = sbr.rel (0) target = $region33
    $region32: #{tpu_custom_call.1} parent=1 // pred_region
      %s185 = ssub.s32 128, 128
      %186 = vsyncadd [#allocation5], %s185
      %s187 = sshll.u32 [#allocation8], 4
      %s188 = int_to_ptr.vmem [resolvable:$true] %s187
      %193 = dma.vmem_to_hbm [thread:$0]  %s188, 128, %s3, [#allocation5], 64, 64, 4
    $region33: #{tpu_custom_call.1} parent=1 // pred_fallthru
      _
    // Predicated region
    $region34: #{tpu_custom_call.1} parent=1 // pred_check
      _
    $region35: #{tpu_custom_call.1} parent=1 // pred_check_branch
      %195 = sbr.rel (0) target = $region37
    $region36: #{tpu_custom_call.1} parent=1 // pred_region
      %s197 = ssub.s32 128, 128
      %198 = vsyncadd [#allocation10], %s197
      %s199 = sshll.u32 [#allocation9], 4
      %s200 = int_to_ptr.vmem [resolvable:$true] %s199
      %205 = dma.vmem_to_hbm [thread:$0]  %s200, 128, %s4, [#allocation10], 64, 64, 4
    $region37: #{tpu_custom_call.1} parent=1 // pred_fallthru
      _
    // Predicated region
    $region38: #{tpu_custom_call.1} parent=1 // pred_check
      _
    $region39: #{tpu_custom_call.1} parent=1 // pred_check_branch
      %207 = sbr.rel (0) target = $region41
    $region40: #{tpu_custom_call.1} parent=1 // pred_region
      %s209 = ssub.s32 128, 128
      %210 = vsyncadd [#allocation10], %s209
      %s211 = sshll.u32 [#allocation11], 4
      %s212 = int_to_ptr.vmem [resolvable:$true] %s211
      %217 = dma.vmem_to_hbm [thread:$0]  %s212, 128, %s5, [#allocation10], 64, 64, 4
    $region41: #{tpu_custom_call.1} parent=1 // pred_fallthru
      _
    // Predicated region
    $region42: #{tpu_custom_call.1} parent=1 // pred_check
      _
    $region43: #{tpu_custom_call.1} parent=1 // pred_check_branch
      %219 = sbr.rel (0) target = $region45
    $region44: #{tpu_custom_call.1} parent=1 // pred_region
      %220 = dma.done [#allocation5], 128
    $region45: #{tpu_custom_call.1} parent=1 // pred_fallthru
      _
    // Predicated region
    $region46: #{tpu_custom_call.1} parent=1 // pred_check
      _
    $region47: #{tpu_custom_call.1} parent=1 // pred_check_branch
      %222 = sbr.rel (0) target = $region49
    $region48: #{tpu_custom_call.1} parent=1 // pred_region
      %223 = dma.done [#allocation10], 128
    $region49: #{tpu_custom_call.1} parent=1 // pred_fallthru
      _
    // Predicated region
    $region50: #{tpu_custom_call.1} parent=1 // pred_check
      _
    $region51: #{tpu_custom_call.1} parent=1 // pred_check_branch
      %225 = sbr.rel (0) target = $region53
    $region52: #{tpu_custom_call.1} parent=1 // pred_region
      %226 = dma.done [#allocation10], 128
    $region53: #{tpu_custom_call.1} parent=1 // pred_fallthru
      _
    %227 = vsyncpa [#allocation4], 1
    %228 = vsyncpa [#allocation7], 1
    %229 = vsyncpa [#allocation5], 1
    %230 = vsyncpa [#allocation10], 1

</llo_original>
